<compile_context>
chip_gen: v7x
topology: tpu7x:2x2x1
jax: 0.10.0
libtpu: 0.0.40
codegen_flags: <defaults>
</compile_context>

<pallas_src>
import functools

import jax
import jax.numpy as jnp
from jax.experimental import pallas as pl
from jax.experimental.pallas import tpu as pltpu

_LANE = 128
_SUBLANE = 8


def _round_up(n, m):
    return ((n + m - 1) // m) * m


def _ffn_kernel(x_ref, w1_ref, b1_ref, w2_ref, b2_ref, o_ref):
    """One row-tile of tokens: fc1 -> ReLU -> fc2 -> residual add."""
    x = x_ref[...]                                   # (tm, Ep), input dtype
    xc = x.astype(w1_ref.dtype)                      # matmul operand dtype
    # fc1 + bias + ReLU (dropout1 is identity in eval mode); f32 MXU accum.
    h = jnp.dot(xc, w1_ref[...], preferred_element_type=jnp.float32)
    h = jnp.maximum(h + b1_ref[...], 0.0)            # (tm, Hp) f32
    # fc2 + bias (dropout2 is identity in eval mode); f32 MXU accum.
    y = jnp.dot(h.astype(w2_ref.dtype), w2_ref[...],
                preferred_element_type=jnp.float32)
    y = y + b2_ref[...]                               # (tm, Ep) f32
    # residual add in f32, lane-dense store in the output dtype.
    o_ref[...] = (y + x.astype(jnp.float32)).astype(o_ref.dtype)


@functools.partial(jax.jit, static_argnames=("row_tile", "compute_dtype"))
def pointwise_feedforward(x, w1, b1, w2, b2, *, row_tile=512,
                          compute_dtype=jnp.bfloat16):
    """x: (B, S, E); w1: (E, H); b1: (H,); w2: (H, E); b2: (E,).

    w1/w2 are the transposes of torch's fc1.weight / fc2.weight.
    """
    B, S, E = x.shape
    H = w1.shape[1]
    M = B * S
    out_dtype = x.dtype

    # Lane-dense padding targets (exact for Linear+ReLU+Linear+residual).
    E_pad = _round_up(E, _LANE)
    H_pad = _round_up(H, _LANE)

    # ---- row (token) tile selection --------------------------------------
    tm = max(_SUBLANE,
             min(_round_up(row_tile, _SUBLANE), _round_up(M, _SUBLANE)))

    x_bytes_cons = jnp.dtype(out_dtype).itemsize          # conservative (f32 path)
    w_bytes = jnp.dtype(compute_dtype).itemsize
    out_bytes = jnp.dtype(out_dtype).itemsize

    def vmem_needed(t):
        x_buf = 2 * t * E_pad * max(x_bytes_cons, w_bytes)   # double-buffered x
        o_buf = 2 * t * E_pad * out_bytes                    # double-buffered out
        wt = 2 * 2 * E_pad * H_pad * w_bytes                 # W1 + W2 (2 bufs each)
        b = 2 * (H_pad + E_pad) * 4                          # biases (f32)
        tmp = t * H_pad * 4 + 2 * t * E_pad * 4              # f32 h / y temps
        return x_buf + o_buf + wt + b + tmp

    _VMEM_TARGET = 48 << 20        # leaves headroom on v7x's 64 MiB/TC
    while tm > _SUBLANE and vmem_needed(tm) > _VMEM_TARGET:
        tm = max(_SUBLANE, _round_up(tm // 2, _SUBLANE))

    # If M is 8-aligned, prefer a tile that divides M exactly (skips the row
    # padding copy).  Only accept it if it is not much smaller than the target.
    if M % _SUBLANE == 0 and M % tm != 0:
        t = min(tm, M)
        while t >= _SUBLANE and M % t != 0:
            t -= _SUBLANE
        if t >= max(_SUBLANE, tm // 4):
            tm = t

    M_pad = _round_up(M, tm)
    grid = (M_pad // tm,)   # "parallel": shards across TCs on megacore/v7x
    # TODO(synk): for very large E/H (transformer-scale FFN) add a tiled
    # hidden-dim grid axis with a pl.when-initialized accumulator instead of
    # keeping full W1/W2 resident in VMEM.

    # ---- operand staging ---------------------------------------------------
    x2d = x.reshape(M, E)
    needs_x_pad = (E_pad != E) or (M_pad != M)
    if needs_x_pad:
        # One fused wrapper pass: cast to the streaming dtype + zero-pad.
        x2d = jnp.pad(x2d.astype(compute_dtype),
                      ((0, M_pad - M), (0, E_pad - E)))
    # else: fast path -- x goes straight into the kernel (no extra HBM pass);
    # the cast to the matmul dtype happens per-tile in VMEM.

    w1p = jnp.pad(w1.astype(compute_dtype), ((0, E_pad - E), (0, H_pad - H)))
    w2p = jnp.pad(w2.astype(compute_dtype), ((0, H_pad - H), (0, E_pad - E)))
    b1p = jnp.pad(b1.astype(jnp.float32), (0, H_pad - H)).reshape(1, H_pad)
    b2p = jnp.pad(b2.astype(jnp.float32), (0, E_pad - E)).reshape(1, E_pad)

    vmem_limit = int(min(max(vmem_needed(tm) + (8 << 20), 32 << 20), 64 << 20))

    x_bytes = jnp.dtype(x2d.dtype).itemsize
    cost = pl.CostEstimate(
        flops=4 * M_pad * E_pad * H_pad,              # two matmuls
        transcendentals=0,
        bytes_accessed=(M_pad * E_pad * (x_bytes + out_bytes)
                        + 2 * E_pad * H_pad * w_bytes
                        + 4 * (E_pad + H_pad)),
    )

    out2d = pl.pallas_call(
        _ffn_kernel,
        out_shape=jax.ShapeDtypeStruct((M_pad, E_pad), out_dtype),
        grid_spec=pltpu.PrefetchScalarGridSpec(
            num_scalar_prefetch=0,
            grid=grid,
            in_specs=[
                pl.BlockSpec((tm, E_pad), lambda i: (i, 0)),     # x row tile
                pl.BlockSpec((E_pad, H_pad), lambda i: (0, 0)),  # W1 (resident)
                pl.BlockSpec((1, H_pad), lambda i: (0, 0)),      # b1
                pl.BlockSpec((H_pad, E_pad), lambda i: (0, 0)),  # W2 (resident)
                pl.BlockSpec((1, E_pad), lambda i: (0, 0)),      # b2
            ],
            out_specs=pl.BlockSpec((tm, E_pad), lambda i: (i, 0)),
        ),
        compiler_params=pltpu.CompilerParams(
            dimension_semantics=("parallel",),
            vmem_limit_bytes=vmem_limit,
        ),
        cost_estimate=cost,
    )(x2d, w1p, b1p, w2p, b2p)

    if needs_x_pad:
        out2d = out2d[:M, :E]
    return out2d.reshape(B, S, E)


def _reference(x, w1, b1, w2, b2):
    h = jnp.maximum(x @ w1 + b1, 0.0)
    return h @ w2 + b2 + x


if __name__ == "__main__":
    # Small shapes consistent with the module: (batch, seq, embed)
    batch, seq, embed, hidden = 2, 8, 32, 64

    key = jax.random.PRNGKey(0)
    kx, kw1, kb1, kw2, kb2 = jax.random.split(key, 5)

    x = jax.random.normal(kx, (batch, seq, embed), dtype=jnp.float32)
    # torch.nn.Linear(embed, hidden).weight has shape (hidden, embed);
    # we store the transpose (embed, hidden) so the kernel does x @ W1.
    w1 = jax.random.normal(kw1, (embed, hidden), dtype=jnp.float32) * 0.1
    b1 = jax.random.normal(kb1, (hidden,), dtype=jnp.float32) * 0.1
    w2 = jax.random.normal(kw2, (hidden, embed), dtype=jnp.float32) * 0.1
    b2 = jax.random.normal(kb2, (embed,), dtype=jnp.float32) * 0.1

    ref = _reference(x, w1, b1, w2, b2)

    # Exact f32 path (tight tolerance).
    out_f32 = pointwise_feedforward(x, w1, b1, w2, b2,
                                    compute_dtype=jnp.float32)
    jax.block_until_ready(out_f32)
    assert out_f32.shape == x.shape
    assert jnp.allclose(out_f32, ref, atol=1e-4, rtol=1e-4)

    # Default bf16-streaming path (f32 accumulation; bf16 matmul precision).
    out_bf16 = pointwise_feedforward(x, w1, b1, w2, b2)
    jax.block_until_ready(out_bf16)
    assert out_bf16.shape == x.shape
    assert jnp.allclose(out_bf16, ref, atol=5e-2, rtol=5e-2)

    # Ragged shapes (M, E, H not multiples of tiles) exercise the padding path.
    xb = jax.random.normal(kx, (3, 5, 50), dtype=jnp.float32)
    w1b = jax.random.normal(kw1, (50, 100), dtype=jnp.float32) * 0.1
    b1b = jax.random.normal(kb1, (100,), dtype=jnp.float32) * 0.1
    w2b = jax.random.normal(kw2, (100, 50), dtype=jnp.float32) * 0.1
    b2b = jax.random.normal(kb2, (50,), dtype=jnp.float32) * 0.1
    out_b = pointwise_feedforward(xb, w1b, b1b, w2b, b2b,
                                  compute_dtype=jnp.float32)
    jax.block_until_ready(out_b)
    assert out_b.shape == xb.shape
    assert jnp.allclose(out_b, _reference(xb, w1b, b1b, w2b, b2b),
                        atol=1e-4, rtol=1e-4)

    # Aligned shapes (E, H multiples of 128; M multiple of 8) exercise the
    # zero-copy fast path (x fed to the kernel untouched).
    xc = jax.random.normal(kx, (2, 8, 128), dtype=jnp.float32)
    w1c = jax.random.normal(kw1, (128, 256), dtype=jnp.float32) * 0.1
    b1c = jax.random.normal(kb1, (256,), dtype=jnp.float32) * 0.1
    w2c = jax.random.normal(kw2, (256, 128), dtype=jnp.float32) * 0.1
    b2c = jax.random.normal(kb2, (128,), dtype=jnp.float32) * 0.1
    refc = _reference(xc, w1c, b1c, w2c, b2c)
    out_c32 = pointwise_feedforward(xc, w1c, b1c, w2c, b2c,
                                    compute_dtype=jnp.float32)
    out_c16 = pointwise_feedforward(xc, w1c, b1c, w2c, b2c)
    jax.block_until_ready((out_c32, out_c16))
    assert jnp.allclose(out_c32, refc, atol=1e-4, rtol=1e-4)
    assert jnp.allclose(out_c16, refc, atol=5e-2, rtol=5e-2)

    # TODO(synk): training-mode stochastic dropout (pltpu.prng_random_bits
    # masking) is not implemented; dropout is identity in eval mode.
    print("KERNEL_OK")
</pallas_src>

<mosaic_0001>
module attributes {stable_mosaic.version = 11 : i64} {
  func.func @_ffn_kernel(%arg0: i32, %arg1: memref<16x128xf32, #tpu.memory_space<vmem>>, %arg2: memref<128x128xf32, #tpu.memory_space<vmem>>, %arg3: memref<1x128xf32, #tpu.memory_space<vmem>>, %arg4: memref<128x128xf32, #tpu.memory_space<vmem>>, %arg5: memref<1x128xf32, #tpu.memory_space<vmem>>, %arg6: memref<16x128xf32, #tpu.memory_space<vmem>>) attributes {dimension_semantics = [#tpu.dimension_semantics<parallel>], iteration_bounds = array<i64: 1>, scalar_prefetch = 0 : i64, scratch_operands = 0 : i64, tpu.core_type = #tpu.core_type<tc>, window_params = [{transform_indices = @transform_0, window_bounds = array<i64: 16, 128>}, {pipeline_mode = #tpu.pipeline_mode<synchronous>, transform_indices = @transform_1, window_bounds = array<i64: 128, 128>}, {pipeline_mode = #tpu.pipeline_mode<synchronous>, transform_indices = @transform_2, window_bounds = array<i64: 1, 128>}, {pipeline_mode = #tpu.pipeline_mode<synchronous>, transform_indices = @transform_3, window_bounds = array<i64: 128, 128>}, {pipeline_mode = #tpu.pipeline_mode<synchronous>, transform_indices = @transform_4, window_bounds = array<i64: 1, 128>}, {transform_indices = @transform_5, window_bounds = array<i64: 16, 128>}]} {
    %c0 = arith.constant 0 : index
    %c0_0 = arith.constant 0 : index
    %0 = vector.load %arg1[%c0, %c0_0] : memref<16x128xf32, #tpu.memory_space<vmem>>, vector<16x128xf32>
    %c0_1 = arith.constant 0 : index
    %c0_2 = arith.constant 0 : index
    %1 = vector.load %arg2[%c0_1, %c0_2] : memref<128x128xf32, #tpu.memory_space<vmem>>, vector<128x128xf32>
    %cst = arith.constant dense<0.000000e+00> : vector<16x128xf32>
    %2 = tpu.matmul %0, %1, %cst {dimension_numbers = #tpu.dot_dimension_numbers<[1], [0], [0], [1], [0, 0, 1, 1], [], []>} : vector<16x128xf32>, vector<128x128xf32>, vector<16x128xf32> -> vector<16x128xf32>
    %c0_3 = arith.constant 0 : index
    %c0_4 = arith.constant 0 : index
    %3 = vector.load %arg3[%c0_3, %c0_4] : memref<1x128xf32, #tpu.memory_space<vmem>>, vector<1x128xf32>
    %4 = vector.broadcast %3 : vector<1x128xf32> to vector<16x128xf32>
    %5 = arith.addf %2, %4 : vector<16x128xf32>
    %cst_5 = arith.constant 0.000000e+00 : f32
    %6 = vector.broadcast %cst_5 : f32 to vector<16x128xf32>
    %7 = arith.maximumf %5, %6 : vector<16x128xf32>
    %c0_6 = arith.constant 0 : index
    %c0_7 = arith.constant 0 : index
    %8 = vector.load %arg4[%c0_6, %c0_7] : memref<128x128xf32, #tpu.memory_space<vmem>>, vector<128x128xf32>
    %cst_8 = arith.constant dense<0.000000e+00> : vector<16x128xf32>
    %9 = tpu.matmul %7, %8, %cst_8 {dimension_numbers = #tpu.dot_dimension_numbers<[1], [0], [0], [1], [0, 0, 1, 1], [], []>} : vector<16x128xf32>, vector<128x128xf32>, vector<16x128xf32> -> vector<16x128xf32>
    %c0_9 = arith.constant 0 : index
    %c0_10 = arith.constant 0 : index
    %10 = vector.load %arg5[%c0_9, %c0_10] : memref<1x128xf32, #tpu.memory_space<vmem>>, vector<1x128xf32>
    %11 = vector.broadcast %10 : vector<1x128xf32> to vector<16x128xf32>
    %12 = arith.addf %9, %11 : vector<16x128xf32>
    %13 = arith.addf %12, %0 : vector<16x128xf32>
    %c0_11 = arith.constant 0 : index
    %c0_12 = arith.constant 0 : index
    %14 = vector.load %arg6[%c0_11, %c0_12] : memref<16x128xf32, #tpu.memory_space<vmem>>, vector<16x128xf32>
    tpu.vector_store %arg6[%c0_11, %c0_12], %13 {strides = array<i32>} : memref<16x128xf32, #tpu.memory_space<vmem>>, vector<16x128xf32>,
    return
  }
  func.func @transform_0(%arg0: i32) -> (i32, i32) {
    %c0_i32 = arith.constant 0 : i32
    %c0_i32_0 = arith.constant 0 : i32
    return %arg0, %c0_i32 : i32, i32
  }
  func.func @transform_1(%arg0: i32) -> (i32, i32) {
    %c0_i32 = arith.constant 0 : i32
    %c0_i32_0 = arith.constant 0 : i32
    %c0_i32_1 = arith.constant 0 : i32
    return %c0_i32, %c0_i32_0 : i32, i32
  }
  func.func @transform_2(%arg0: i32) -> (i32, i32) {
    %c0_i32 = arith.constant 0 : i32
    %c0_i32_0 = arith.constant 0 : i32
    %c0_i32_1 = arith.constant 0 : i32
    return %c0_i32, %c0_i32_0 : i32, i32
  }
  func.func @transform_3(%arg0: i32) -> (i32, i32) {
    %c0_i32 = arith.constant 0 : i32
    %c0_i32_0 = arith.constant 0 : i32
    %c0_i32_1 = arith.constant 0 : i32
    return %c0_i32, %c0_i32_0 : i32, i32
  }
  func.func @transform_4(%arg0: i32) -> (i32, i32) {
    %c0_i32 = arith.constant 0 : i32
    %c0_i32_0 = arith.constant 0 : i32
    %c0_i32_1 = arith.constant 0 : i32
    return %c0_i32, %c0_i32_0 : i32, i32
  }
  func.func @transform_5(%arg0: i32) -> (i32, i32) {
    %c0_i32 = arith.constant 0 : i32
    %c0_i32_0 = arith.constant 0 : i32
    return %arg0, %c0_i32 : i32, i32
  }
}

</mosaic_0001>

<llo_original>
// kernel: pointwise_feedforward.1
$region0: #{pointwise_feedforward.1}
  #allocation0 [shape = 'u32[]', space=smem, size = 0x4, offset = 0x4, fixed_abs, tag = 'smem constant byte address 0x4 - core index']
  #allocation1 [shape = 'u32[144,128]{1,0:T(1,128)}', space=vmem, size = 0x12000, scoped, tag = 'internal scratch']
  %s0 = inlined_call_operand.vmem [shape: f32[16,128], index: 0, kind: input, shape index: {}]
  %s1 = inlined_call_operand.vmem [shape: f32[128,128], index: 1, kind: input, shape index: {}]
  %s2 = inlined_call_operand.vmem [shape: f32[1,128], index: 2, kind: input, shape index: {}]
  %s3 = inlined_call_operand.vmem [shape: f32[128,128], index: 3, kind: input, shape index: {}]
  %s4 = inlined_call_operand.vmem [shape: f32[1,128], index: 4, kind: input, shape index: {}]
  %s5 = inlined_call_operand.vmem [shape: f32[16,128], index: 5, kind: output, shape index: {}]
  %s6 = sld [smem:[#allocation0]]
  $region30: #{pointwise_feedforward.1} parent=0
    _
  %s8 = ssub.s32 1, %s6
  %s9 = scalar_select 0, %s8, %s6
  // Predicated region
  $region2: #{pointwise_feedforward.1} parent=0 // pred_check
    _
  $region3: #{pointwise_feedforward.1} parent=0 // pred_check_branch
    %11 = sbr.rel (0) target = $region5
  $region4: #{pointwise_feedforward.1} parent=0 // pred_region
    _
  $region5: #{pointwise_feedforward.1} parent=0 // pred_fallthru
    _
  // Predicated region
  $region6: #{pointwise_feedforward.1} parent=0 // pred_check
    _
  $region7: #{pointwise_feedforward.1} parent=0 // pred_check_branch
    %13 = sbr.rel (0) target = $region9
  $region8: #{pointwise_feedforward.1} parent=0 // pred_region
    _
  $region9: #{pointwise_feedforward.1} parent=0 // pred_fallthru
    _
  // Predicated region
  $region10: #{pointwise_feedforward.1} parent=0 // pred_check
    _
  $region11: #{pointwise_feedforward.1} parent=0 // pred_check_branch
    %15 = sbr.rel (0) target = $region13
  $region12: #{pointwise_feedforward.1} parent=0 // pred_region
    _
  $region13: #{pointwise_feedforward.1} parent=0 // pred_fallthru
    _
  // Predicated region
  $region14: #{pointwise_feedforward.1} parent=0 // pred_check
    _
  $region15: #{pointwise_feedforward.1} parent=0 // pred_check_branch
    %17 = sbr.rel (0) target = $region17
  $region16: #{pointwise_feedforward.1} parent=0 // pred_region
    _
  $region17: #{pointwise_feedforward.1} parent=0 // pred_fallthru
    _
  // Predicated region
  $region18: #{pointwise_feedforward.1} parent=0 // pred_check
    _
  $region19: #{pointwise_feedforward.1} parent=0 // pred_check_branch
    %19 = sbr.rel (0) target = $region21
  $region20: #{pointwise_feedforward.1} parent=0 // pred_region
    _
  $region21: #{pointwise_feedforward.1} parent=0 // pred_fallthru
    _
  %v20 = vld [vmem:[%s0] sm:$0xff]
  %v21 = vld [vmem:[%s0 + $0x8] sm:$0xff]
  %v22 = vld [vmem:[%s1] sm:$0xff]
  %v23 = vld [vmem:[%s1 + $0x8] sm:$0xff]
  %v24 = vld [vmem:[%s1 + $0x10] sm:$0xff]
  %v25 = vld [vmem:[%s1 + $0x18] sm:$0xff]
  %v26 = vld [vmem:[%s1 + $0x20] sm:$0xff]
  %v27 = vld [vmem:[%s1 + $0x28] sm:$0xff]
  %v28 = vld [vmem:[%s1 + $0x30] sm:$0xff]
  %v29 = vld [vmem:[%s1 + $0x38] sm:$0xff]
  %v30 = vld [vmem:[%s1 + $0x40] sm:$0xff]
  %v31 = vld [vmem:[%s1 + $0x48] sm:$0xff]
  %v32 = vld [vmem:[%s1 + $0x50] sm:$0xff]
  %v33 = vld [vmem:[%s1 + $0x58] sm:$0xff]
  %v34 = vld [vmem:[%s1 + $0x60] sm:$0xff]
  %v35 = vld [vmem:[%s1 + $0x68] sm:$0xff]
  %v36 = vld [vmem:[%s1 + $0x70] sm:$0xff]
  %v37 = vld [vmem:[%s1 + $0x78] sm:$0xff]
  %v38 = vld [vmem:[%s2] sm:$0x1]
  %v40 = vlaneseq
  %v41 = vshrl.u32 %v40, 7
  %v42 = vsub.s32 0, %v41
  %v43 = vrot.slane %v38, %v42
  %45 = vmatprep.subr.mxu0 0.0
  %46 = vmatpush1.msra.mxu0 %v22
  %47 = vmatprep.subr.mxu0 0.0
  %48 = vmatpush1.msra.mxu0 %v23
  %49 = vmatprep.subr.mxu0 0.0
  %50 = vmatpush1.msra.mxu0 %v24
  %51 = vmatprep.subr.mxu0 0.0
  %52 = vmatpush1.msra.mxu0 %v25
  %53 = vmatprep.subr.mxu0 0.0
  %54 = vmatpush1.msra.mxu0 %v26
  %55 = vmatprep.subr.mxu0 0.0
  %56 = vmatpush1.msra.mxu0 %v27
  %57 = vmatprep.subr.mxu0 0.0
  %58 = vmatpush1.msra.mxu0 %v28
  %59 = vmatprep.subr.mxu0 0.0
  %60 = vmatpush1.msra.mxu0 %v29
  %61 = vmatprep.subr.mxu0 0.0
  %62 = vmatpush1.msra.mxu0 %v30
  %63 = vmatprep.subr.mxu0 0.0
  %64 = vmatpush1.msra.mxu0 %v31
  %65 = vmatprep.subr.mxu0 0.0
  %66 = vmatpush1.msra.mxu0 %v32
  %67 = vmatprep.subr.mxu0 0.0
  %68 = vmatpush1.msra.mxu0 %v33
  %69 = vmatprep.subr.mxu0 0.0
  %70 = vmatpush1.msra.mxu0 %v34
  %71 = vmatprep.subr.mxu0 0.0
  %72 = vmatpush1.msra.mxu0 %v35
  %73 = vmatprep.subr.mxu0 0.0
  %74 = vmatpush1.msra.mxu0 %v36
  %75 = vmatprep.subr.mxu0 0.0
  %76 = vmatpush1.msra.mxu0 %v37
  %77 = vmatprep.subr.mxu0 0.0
  %78 = vmatpush1.msra.mxu0 0.0
  %79 = vmatprep.subr.mxu0 0.0
  %80 = vmatpush1.msra.mxu0 0.0
  %81 = vmatprep.subr.mxu0 0.0
  %82 = vmatpush1.msra.mxu0 0.0
  %83 = vmatprep.subr.mxu0 0.0
  %84 = vmatpush1.msra.mxu0 0.0
  %85 = vmatprep.subr.mxu0 0.0
  %86 = vmatpush1.msra.mxu0 0.0
  %87 = vmatprep.subr.mxu0 0.0
  %88 = vmatpush1.msra.mxu0 0.0
  %89 = vmatprep.subr.mxu0 0.0
  %90 = vmatpush1.msra.mxu0 0.0
  %91 = vmatprep.subr.mxu0 0.0
  %92 = vmatpush1.msra.mxu0 0.0
  %93 = vmatprep.subr.mxu0 0.0
  %94 = vmatpush1.msra.mxu0 0.0
  %95 = vmatprep.subr.mxu0 0.0
  %96 = vmatpush1.msra.mxu0 0.0
  %97 = vmatprep.subr.mxu0 0.0
  %98 = vmatpush1.msra.mxu0 0.0
  %99 = vmatprep.subr.mxu0 0.0
  %100 = vmatpush1.msra.mxu0 0.0
  %101 = vmatprep.subr.mxu0 0.0
  %102 = vmatpush1.msra.mxu0 0.0
  %103 = vmatprep.subr.mxu0 0.0
  %104 = vmatpush1.msra.mxu0 0.0
  %105 = vmatprep.subr.mxu0 0.0
  %106 = vmatpush1.msra.mxu0 0.0
  %107 = vmatprep.subr.mxu0 0.0
  %108 = vmatpush1.msra.mxu0 0.0
  %109 = vmatprep.mubr.f32.mxu0 0.0
  %110 = vmatmul.mubr.f32.gmra.mrb[0].mxu0 %v20
  %v111 = vpop.f32.mrb[0].mxu0
  %v112 = vadd.f32 %v43, %v111
  %v113 = vpop.f32.mrb[0].mxu0
  %114 = vmatprep.mubr.f32.mxu0 0.0
  %115 = vmatmul.mubr.f32.gmra.mrb[0].mxu0 %v21
  %v116 = vpop.f32.mrb[0].mxu0
  %v117 = vadd.f32 %v43, %v116
  %v118 = vpop.f32.mrb[0].mxu0
  %119 = vdwg.mxu0
  %v120 = vmax.f32 %v112, 0.0
  %v121 = vmax.f32 %v117, 0.0
  %v122 = vld [vmem:[%s3] sm:$0xff]
  %v123 = vld [vmem:[%s3 + $0x8] sm:$0xff]
  %v124 = vld [vmem:[%s3 + $0x10] sm:$0xff]
  %v125 = vld [vmem:[%s3 + $0x18] sm:$0xff]
  %v126 = vld [vmem:[%s3 + $0x20] sm:$0xff]
  %v127 = vld [vmem:[%s3 + $0x28] sm:$0xff]
  %v128 = vld [vmem:[%s3 + $0x30] sm:$0xff]
  %v129 = vld [vmem:[%s3 + $0x38] sm:$0xff]
  %v130 = vld [vmem:[%s3 + $0x40] sm:$0xff]
  %v131 = vld [vmem:[%s3 + $0x48] sm:$0xff]
  %v132 = vld [vmem:[%s3 + $0x50] sm:$0xff]
  %v133 = vld [vmem:[%s3 + $0x58] sm:$0xff]
  %v134 = vld [vmem:[%s3 + $0x60] sm:$0xff]
  %v135 = vld [vmem:[%s3 + $0x68] sm:$0xff]
  %v136 = vld [vmem:[%s3 + $0x70] sm:$0xff]
  %v137 = vld [vmem:[%s3 + $0x78] sm:$0xff]
  %v138 = vld [vmem:[%s4] sm:$0x1]
  %v140 = vlaneseq
  %v141 = vshrl.u32 %v140, 7
  %v142 = vsub.s32 0, %v141
  %v143 = vrot.slane %v138, %v142
  %145 = vmatprep.subr.mxu0 0.0
  %146 = vmatpush1.msra.mxu0 %v122
  %147 = vmatprep.subr.mxu0 0.0
  %148 = vmatpush1.msra.mxu0 %v123
  %149 = vmatprep.subr.mxu0 0.0
  %150 = vmatpush1.msra.mxu0 %v124
  %151 = vmatprep.subr.mxu0 0.0
  %152 = vmatpush1.msra.mxu0 %v125
  %153 = vmatprep.subr.mxu0 0.0
  %154 = vmatpush1.msra.mxu0 %v126
  %155 = vmatprep.subr.mxu0 0.0
  %156 = vmatpush1.msra.mxu0 %v127
  %157 = vmatprep.subr.mxu0 0.0
  %158 = vmatpush1.msra.mxu0 %v128
  %159 = vmatprep.subr.mxu0 0.0
  %160 = vmatpush1.msra.mxu0 %v129
  %161 = vmatprep.subr.mxu0 0.0
  %162 = vmatpush1.msra.mxu0 %v130
  %163 = vmatprep.subr.mxu0 0.0
  %164 = vmatpush1.msra.mxu0 %v131
  %165 = vmatprep.subr.mxu0 0.0
  %166 = vmatpush1.msra.mxu0 %v132
  %167 = vmatprep.subr.mxu0 0.0
  %168 = vmatpush1.msra.mxu0 %v133
  %169 = vmatprep.subr.mxu0 0.0
  %170 = vmatpush1.msra.mxu0 %v134
  %171 = vmatprep.subr.mxu0 0.0
  %172 = vmatpush1.msra.mxu0 %v135
  %173 = vmatprep.subr.mxu0 0.0
  %174 = vmatpush1.msra.mxu0 %v136
  %175 = vmatprep.subr.mxu0 0.0
  %176 = vmatpush1.msra.mxu0 %v137
  %177 = vmatprep.subr.mxu0 0.0
  %178 = vmatpush1.msra.mxu0 0.0
  %179 = vmatprep.subr.mxu0 0.0
  %180 = vmatpush1.msra.mxu0 0.0
  %181 = vmatprep.subr.mxu0 0.0
  %182 = vmatpush1.msra.mxu0 0.0
  %183 = vmatprep.subr.mxu0 0.0
  %184 = vmatpush1.msra.mxu0 0.0
  %185 = vmatprep.subr.mxu0 0.0
  %186 = vmatpush1.msra.mxu0 0.0
  %187 = vmatprep.subr.mxu0 0.0
  %188 = vmatpush1.msra.mxu0 0.0
  %189 = vmatprep.subr.mxu0 0.0
  %190 = vmatpush1.msra.mxu0 0.0
  %191 = vmatprep.subr.mxu0 0.0
  %192 = vmatpush1.msra.mxu0 0.0
  %193 = vmatprep.subr.mxu0 0.0
  %194 = vmatpush1.msra.mxu0 0.0
  %195 = vmatprep.subr.mxu0 0.0
  %196 = vmatpush1.msra.mxu0 0.0
  %197 = vmatprep.subr.mxu0 0.0
  %198 = vmatpush1.msra.mxu0 0.0
  %199 = vmatprep.subr.mxu0 0.0
  %200 = vmatpush1.msra.mxu0 0.0
  %201 = vmatprep.subr.mxu0 0.0
  %202 = vmatpush1.msra.mxu0 0.0
  %203 = vmatprep.subr.mxu0 0.0
  %204 = vmatpush1.msra.mxu0 0.0
  %205 = vmatprep.subr.mxu0 0.0
  %206 = vmatpush1.msra.mxu0 0.0
  %207 = vmatprep.subr.mxu0 0.0
  %208 = vmatpush1.msra.mxu0 0.0
  %209 = vmatprep.mubr.f32.mxu0 0.0
  %210 = vmatmul.mubr.f32.gmra.mrb[0].mxu0 %v120
  %v211 = vpop.f32.mrb[0].mxu0
  %v212 = vadd.f32 %v143, %v211
  %v213 = vpop.f32.mrb[0].mxu0
  %214 = vmatprep.mubr.f32.mxu0 0.0
  %215 = vmatmul.mubr.f32.gmra.mrb[0].mxu0 %v121
  %v216 = vpop.f32.mrb[0].mxu0
  %v217 = vadd.f32 %v143, %v216
  %v218 = vpop.f32.mrb[0].mxu0
  %219 = vdwg.mxu0
  %v220 = vadd.f32 %v212, %v20
  %v221 = vadd.f32 %v217, %v21
  %222 = vst [vmem:[%s5] sm:$0xff] %v220
  %223 = vst [vmem:[%s5 + $0x8] sm:$0xff] %v221
  // Predicated region
  $region22: #{pointwise_feedforward.1} parent=0 // pred_check
    _
  $region23: #{pointwise_feedforward.1} parent=0 // pred_check_branch
    %225 = sbr.rel (0) target = $region25
  $region24: #{pointwise_feedforward.1} parent=0 // pred_region
    _
  $region25: #{pointwise_feedforward.1} parent=0 // pred_fallthru
    _
  // Predicated region
  $region26: #{pointwise_feedforward.1} parent=0 // pred_check
    _
  $region27: #{pointwise_feedforward.1} parent=0 // pred_check_branch
    %227 = sbr.rel (0) target = $region29
  $region28: #{pointwise_feedforward.1} parent=0 // pred_region
    _
  $region29: #{pointwise_feedforward.1} parent=0 // pred_fallthru
    _

</llo_original>
